<compile_context>
chip_gen: v6e
topology: v6e:2x2x1
jax: 0.10.0
libtpu: 0.0.40
codegen_flags: <defaults>
</compile_context>

<pallas_src>
import jax
import jax.numpy as jnp
from jax.experimental import pallas as pl
from jax.experimental.pallas import tpu as pltpu


def _soft_ce_kernel(pred_ref, tgt_ref, ce_ref):
    p = pred_ref[...].astype(jnp.float32)                        # (TM, C)
    t = tgt_ref[...].astype(jnp.float32)                         # (TM, C)

    # Reductions that do NOT depend on the row max (overlap with max chain).
    sum_t = jnp.sum(t, axis=-1, keepdims=True)                   # (TM, 1)
    sum_tp = jnp.sum(t * p, axis=-1, keepdims=True)              # (TM, 1)

    # Numerically-stable log-sum-exp chain.
    m = jnp.max(p, axis=-1, keepdims=True)                       # (TM, 1)
    lse = jnp.log(jnp.sum(jnp.exp(p - m), axis=-1, keepdims=True))  # (TM, 1)

    # sum(-t * (p - (m + lse)), -1) == sum(t) * (m + lse) - sum(t * p)
    ce_ref[...] = sum_t * (m + lse) - sum_tp                     # (TM, 1)


def _pick_tile_rows(n_rows, n_cols, itemsizes, target_block_bytes=4 << 20):
    # Sublane alignment: 8 rows for 4-byte dtypes, 16 for 2-byte, 32 for 1-byte.
    row_align = max(8, 32 // min(itemsizes))
    rows = target_block_bytes // max(1, n_cols * max(itemsizes))
    rows = max(row_align, (rows // row_align) * row_align)
    if n_rows <= rows:
        return n_rows  # tiny input: one block covering everything, grid=(1,)
    return rows


def soft_target_cross_entropy_loss(pred, target, reduction="mean", tile_rows=None):
    """Pallas TPU implementation of SoftTargetCrossEntropyLoss.forward.

    pred, target: arrays of identical shape (..., C); softmax over the last axis.
    reduction: 'mean' | 'sum' | 'none'.
    """
    if reduction not in ("mean", "sum", "none"):
        raise ValueError("{} is not a valid value for reduction".format(reduction))
    assert pred.shape == target.shape

    *lead, C = pred.shape
    pred2 = pred.reshape(-1, C)
    tgt2 = target.reshape(-1, C)
    N = pred2.shape[0]

    if tile_rows is None:
        tile_rows = _pick_tile_rows(
            N, C,
            (jnp.dtype(pred2.dtype).itemsize, jnp.dtype(tgt2.dtype).itemsize),
        )

    grid = (pl.cdiv(N, tile_rows),)

    ce = pl.pallas_call(
        _soft_ce_kernel,
        out_shape=jax.ShapeDtypeStruct((N, 1), jnp.float32),
        grid=grid,
        in_specs=[
            pl.BlockSpec((tile_rows, C), lambda i: (i, 0)),
            pl.BlockSpec((tile_rows, C), lambda i: (i, 0)),
        ],
        out_specs=pl.BlockSpec((tile_rows, 1), lambda i: (i, 0)),
        compiler_params=pltpu.CompilerParams(
            dimension_semantics=("parallel",),
            vmem_limit_bytes=32 * 1024 * 1024,
        ),
    )(pred2, tgt2)

    ce = ce[:, 0]
    if reduction == "mean":
        return jnp.mean(ce)
    if reduction == "sum":
        return jnp.sum(ce)
    return ce.reshape(lead)  # 'none'


def _reference(pred, target, reduction="mean"):
    log_sm = jax.nn.log_softmax(pred.astype(jnp.float32), axis=-1)
    ce = jnp.sum(-target.astype(jnp.float32) * log_sm, axis=-1)
    if reduction == "mean":
        return ce.mean()
    if reduction == "sum":
        return ce.sum()
    return ce


if __name__ == "__main__":
    key = jax.random.PRNGKey(0)
    k_pred, k_tgt, k_pred2, k_tgt2 = jax.random.split(key, 4)

    # Small shapes consistent with HiVT usage: N rows (batch*agents), C classes (modes).
    N, C = 16, 128
    pred = jax.random.normal(k_pred, (N, C), dtype=jnp.float32)
    target = jax.nn.softmax(
        jax.random.normal(k_tgt, (N, C), dtype=jnp.float32), axis=-1)

    loss = jax.block_until_ready(
        soft_target_cross_entropy_loss(pred, target, reduction="mean"))
    ref = _reference(pred, target, reduction="mean")
    assert jnp.allclose(loss, ref, rtol=1e-5, atol=1e-5), (loss, ref)

    # Ragged N (not a multiple of the row tile) with a forced small tile to
    # exercise the multi-step "parallel" grid and masked tail-block writeback.
    N2 = 20
    pred2 = jax.random.normal(k_pred2, (N2, C), dtype=jnp.float32)
    target2 = jax.nn.softmax(
        jax.random.normal(k_tgt2, (N2, C), dtype=jnp.float32), axis=-1)

    loss_sum = jax.block_until_ready(
        soft_target_cross_entropy_loss(pred2, target2, reduction="sum", tile_rows=8))
    ref_sum = _reference(pred2, target2, reduction="sum")
    assert jnp.allclose(loss_sum, ref_sum, rtol=1e-5, atol=1e-5), (loss_sum, ref_sum)

    ce_none = jax.block_until_ready(
        soft_target_cross_entropy_loss(pred2, target2, reduction="none", tile_rows=8))
    ref_none = _reference(pred2, target2, reduction="none")
    assert jnp.allclose(ce_none, ref_none, rtol=1e-5, atol=1e-5)

    # bf16 inputs stay bf16 on the HBM->VMEM wire; f32 math inside the kernel.
    pred_bf = pred.astype(jnp.bfloat16)
    target_bf = target.astype(jnp.bfloat16)
    loss_bf = jax.block_until_ready(
        soft_target_cross_entropy_loss(pred_bf, target_bf, reduction="mean"))
    ref_bf = _reference(pred_bf, target_bf, reduction="mean")
    assert jnp.allclose(loss_bf, ref_bf, rtol=2e-2, atol=2e-2), (loss_bf, ref_bf)

    print("KERNEL_OK")
</pallas_src>

<mosaic_0001>
module attributes {stable_mosaic.version = 11 : i64} {
  func.func @_soft_ce_kernel(%arg0: i32, %arg1: memref<16x128xf32, #tpu.memory_space<vmem>>, %arg2: memref<16x128xf32, #tpu.memory_space<vmem>>, %arg3: memref<16x1xf32, #tpu.memory_space<vmem>>) attributes {dimension_semantics = [#tpu.dimension_semantics<parallel>], iteration_bounds = array<i64: 1>, scalar_prefetch = 0 : i64, scratch_operands = 0 : i64, tpu.core_type = #tpu.core_type<tc>, window_params = [{transform_indices = @transform_0, window_bounds = array<i64: 16, 128>}, {transform_indices = @transform_1, window_bounds = array<i64: 16, 128>}, {transform_indices = @transform_2, window_bounds = array<i64: 16, 1>}]} {
    %c0 = arith.constant 0 : index
    %c0_0 = arith.constant 0 : index
    %0 = vector.load %arg1[%c0, %c0_0] : memref<16x128xf32, #tpu.memory_space<vmem>>, vector<16x128xf32>
    %c0_1 = arith.constant 0 : index
    %c0_2 = arith.constant 0 : index
    %1 = vector.load %arg2[%c0_1, %c0_2] : memref<16x128xf32, #tpu.memory_space<vmem>>, vector<16x128xf32>
    %cst = arith.constant dense<0.000000e+00> : vector<16xf32>
    %2 = vector.multi_reduction <add>, %1, %cst [1] : vector<16x128xf32> to vector<16xf32>
    %3 = vector.shape_cast %2 : vector<16xf32> to vector<16x1xf32>
    %4 = arith.mulf %1, %0 : vector<16x128xf32>
    %cst_3 = arith.constant dense<0.000000e+00> : vector<16xf32>
    %5 = vector.multi_reduction <add>, %4, %cst_3 [1] : vector<16x128xf32> to vector<16xf32>
    %6 = vector.shape_cast %5 : vector<16xf32> to vector<16x1xf32>
    %cst_4 = arith.constant dense<0xFF800000> : vector<16xf32>
    %7 = vector.multi_reduction <maximumf>, %0, %cst_4 [1] : vector<16x128xf32> to vector<16xf32>
    %8 = vector.shape_cast %7 : vector<16xf32> to vector<16x1xf32>
    %9 = vector.broadcast %8 : vector<16x1xf32> to vector<16x128xf32>
    %10 = arith.subf %0, %9 : vector<16x128xf32>
    %11 = math.exp %10 : vector<16x128xf32>
    %cst_5 = arith.constant dense<0.000000e+00> : vector<16xf32>
    %12 = vector.multi_reduction <add>, %11, %cst_5 [1] : vector<16x128xf32> to vector<16xf32>
    %13 = vector.shape_cast %12 : vector<16xf32> to vector<16x1xf32>
    %14 = math.log %13 : vector<16x1xf32>
    %15 = arith.addf %8, %14 : vector<16x1xf32>
    %16 = arith.mulf %3, %15 : vector<16x1xf32>
    %17 = arith.subf %16, %6 : vector<16x1xf32>
    %c0_6 = arith.constant 0 : index
    %c0_7 = arith.constant 0 : index
    %18 = vector.load %arg3[%c0_6, %c0_7] : memref<16x1xf32, #tpu.memory_space<vmem>>, vector<16x1xf32>
    tpu.vector_store %arg3[%c0_6, %c0_7], %17 {strides = array<i32>} : memref<16x1xf32, #tpu.memory_space<vmem>>, vector<16x1xf32>,
    return
  }
  func.func @transform_0(%arg0: i32) -> (i32, i32) {
    %c0_i32 = arith.constant 0 : i32
    %c0_i32_0 = arith.constant 0 : i32
    return %arg0, %c0_i32 : i32, i32
  }
  func.func @transform_1(%arg0: i32) -> (i32, i32) {
    %c0_i32 = arith.constant 0 : i32
    %c0_i32_0 = arith.constant 0 : i32
    return %arg0, %c0_i32 : i32, i32
  }
  func.func @transform_2(%arg0: i32) -> (i32, i32) {
    %c0_i32 = arith.constant 0 : i32
    %c0_i32_0 = arith.constant 0 : i32
    return %arg0, %c0_i32 : i32, i32
  }
}

</mosaic_0001>

<llo_original>
// kernel: tpu_custom_call.1
$region0: #{tpu_custom_call.1}
  #allocation0 [shape = 'u32[]', space=smem, size = 0x4, offset = 0x4, fixed_abs, tag = 'smem constant byte address 0x4 - core index']
  #allocation1 [shape = 'u32[144,128]{1,0:T(1,128)}', space=vmem, size = 0x12000, scoped, tag = 'internal scratch']
  %s0 = inlined_call_operand.hbm [shape: f32[16,128], index: 0, kind: input, shape index: {}]
  %s1 = inlined_call_operand.hbm [shape: f32[16,128], index: 1, kind: input, shape index: {}]
  %s2 = inlined_call_operand.vmem [shape: f32[16,1], index: 2, kind: output, shape index: {}]
  %s3 = sld [smem:[#allocation0]]
  $region26: #{tpu_custom_call.1} parent=0
    _
  %s5 = ssub.s32 1, %s3
  %s6 = scalar_select 0, %s5, %s3
  $region1: #{tpu_custom_call.1} parent=0
    #allocation2 [shape = 'u8[8192]{0}', space=vmem, size = 0x2000, scoped, tag = 'input window, operand 0, single buffered']
    #allocation3 [shape = 's32[1]{0}', space=sflag, size = 0x4, scoped, tag = 'scoped memory for tpu_custom_call.1']
    #allocation4 [shape = 'u8[8192]{0}', space=vmem, size = 0x2000, scoped, tag = 'input window, operand 1, single buffered']
    #allocation5 [shape = 's32[1]{0}', space=sflag, size = 0x4, scoped, tag = 'scoped memory for tpu_custom_call.1']
    %7 = vsyncpa [#allocation3], 0
    %8 = vsyncpa [#allocation5], 0
    // Predicated region
    $region2: #{tpu_custom_call.1} parent=1 // pred_check
      _
    $region3: #{tpu_custom_call.1} parent=1 // pred_check_branch
      %10 = sbr.rel (0) target = $region5
    $region4: #{tpu_custom_call.1} parent=1 // pred_region
      %s12 = ssub.s32 256, 256
      %13 = vsyncadd [#allocation3], %s12
      %s14 = sshll.u32 [#allocation2], 4
      %s15 = int_to_ptr.vmem [resolvable:$true] %s14
      %20 = dma.hbm_to_vmem [thread:$0]  %s0, 256, %s15, [#allocation3], 128, 128, 8
    $region5: #{tpu_custom_call.1} parent=1 // pred_fallthru
      _
    // Predicated region
    $region6: #{tpu_custom_call.1} parent=1 // pred_check
      _
    $region7: #{tpu_custom_call.1} parent=1 // pred_check_branch
      %22 = sbr.rel (0) target = $region9
    $region8: #{tpu_custom_call.1} parent=1 // pred_region
      %s24 = ssub.s32 256, 256
      %25 = vsyncadd [#allocation5], %s24
      %s26 = sshll.u32 [#allocation4], 4
      %s27 = int_to_ptr.vmem [resolvable:$true] %s26
      %32 = dma.hbm_to_vmem [thread:$0]  %s1, 256, %s27, [#allocation5], 128, 128, 8
    $region9: #{tpu_custom_call.1} parent=1 // pred_fallthru
      _
    // Predicated region
    $region10: #{tpu_custom_call.1} parent=1 // pred_check
      _
    $region11: #{tpu_custom_call.1} parent=1 // pred_check_branch
      %34 = sbr.rel (0) target = $region13
    $region12: #{tpu_custom_call.1} parent=1 // pred_region
      %35 = dma.done [#allocation3], 256
    $region13: #{tpu_custom_call.1} parent=1 // pred_fallthru
      _
    // Predicated region
    $region14: #{tpu_custom_call.1} parent=1 // pred_check
      _
    $region15: #{tpu_custom_call.1} parent=1 // pred_check_branch
      %37 = sbr.rel (0) target = $region17
    $region16: #{tpu_custom_call.1} parent=1 // pred_region
      %38 = dma.done [#allocation5], 256
    $region17: #{tpu_custom_call.1} parent=1 // pred_fallthru
      _
    %v39 = vld [vmem:[#allocation2] sm:$0xff]
    %v40 = vld [vmem:[#allocation2 + $0x8] sm:$0xff]
    %v41 = vld [vmem:[#allocation4] sm:$0xff]
    %v42 = vld [vmem:[#allocation4 + $0x8] sm:$0xff]
    %43 = vadd.xlane.f32.xlu0 %v41
    %v44 = vpop.xlane.xlu0 %43
    %45 = vadd.xlane.f32.xlu0 %v42
    %v46 = vpop.xlane.xlu0 %45
    %v47 = vmul.f32 %v41, %v39
    %v48 = vmul.f32 %v42, %v40
    %49 = vadd.xlane.f32.xlu0 %v47
    %v50 = vpop.xlane.xlu0 %49
    %51 = vadd.xlane.f32.xlu0 %v48
    %v52 = vpop.xlane.xlu0 %51
    %53 = vmax.xlane.f32.xlu0 %v39
    %v54 = vpop.xlane.xlu0 %53
    %55 = vmax.xlane.f32.xlu0 %v40
    %v56 = vpop.xlane.xlu0 %55
    %v57 = vsub.f32 %v39, %v54
    %v58 = vsub.f32 %v40, %v56
    %v59 = vmul.f32 %v57, 1.442695
    %v60 = vpow.pop %v59
    %v61 = vmul.f32 %v58, 1.442695
    %v62 = vpow.pop %v61
    %63 = vadd.xlane.f32.xlu0 %v60
    %v64 = vpop.xlane.xlu0 %63
    %65 = vadd.xlane.f32.xlu0 %v62
    %v66 = vpop.xlane.xlu0 %65
    %v67 = vlog2.pop %v64
    %v68 = vmul.f32 %v67, 0.6931472
    %v69 = vlog2.pop %v66
    %v70 = vmul.f32 %v69, 0.6931472
    %v71 = vadd.f32 %v54, %v68
    %v72 = vadd.f32 %v56, %v70
    %v73 = vmul.f32 %v44, %v71
    %v74 = vmul.f32 %v46, %v72
    %v75 = vsub.f32 %v73, %v50
    %v76 = vsub.f32 %v74, %v52
    %vm77 = vcmask 7168
    %78 = vst.msk [vmem:[%s2] sm:$0xff] %vm77, %v75
    %79 = vst.msk [vmem:[%s2 + $0x8] sm:$0xff] %vm77, %v76
    // Predicated region
    $region18: #{tpu_custom_call.1} parent=1 // pred_check
      _
    $region19: #{tpu_custom_call.1} parent=1 // pred_check_branch
      %81 = sbr.rel (0) target = $region21
    $region20: #{tpu_custom_call.1} parent=1 // pred_region
      _
    $region21: #{tpu_custom_call.1} parent=1 // pred_fallthru
      _
    // Predicated region
    $region22: #{tpu_custom_call.1} parent=1 // pred_check
      _
    $region23: #{tpu_custom_call.1} parent=1 // pred_check_branch
      %83 = sbr.rel (0) target = $region25
    $region24: #{tpu_custom_call.1} parent=1 // pred_region
      _
    $region25: #{tpu_custom_call.1} parent=1 // pred_fallthru
      _
    %84 = vsyncpa [#allocation3], 1
    %85 = vsyncpa [#allocation5], 1

</llo_original>
